<compile_context>
chip_gen: v7x
topology: tpu7x:2x2x1
jax: 0.10.0
libtpu: 0.0.40
codegen_flags: <defaults>
</compile_context>

<pallas_src>
import numpy as np
import jax
import jax.numpy as jnp
from jax import lax
from jax.experimental import pallas as pl
from jax.experimental.pallas import tpu as pltpu

# ---- static model configuration (len = 32) ----
B = 2              # batch
L = 32             # self.len  (input sequence length)
C1 = 5             # conv1 out channels
C2 = 5             # conv2 out channels
K = 3              # conv kernel size
L1 = L - 2         # length after conv1 (valid conv)           = 30
LP = L1 // 2       # length after maxpool(2,2)                  = 15
L2 = LP - 2        # length after conv2                         = 13
F = C2 * L2        # fc1 in_features = 5*((len-2)//2 - 2)       = 65
assert L1 % 2 == 0, "maxpool(2,2) layout assumes even conv1 length"

NOUT = 2           # fc1 out_features
NOUT_PAD = 128     # lane-dense padded output width
ODD_OFF = 128      # lane-aligned column offset of the "odd" pooling half
DTYPE = jnp.bfloat16

# ---- packed parameter slab layout (bf16, 112 x 256) ----
COLS = 256
R_W1 = 0           # rows   0:32,  cols 0:256   conv1 Toeplitz with pool folded in
R_W2 = 32          # rows  32:107, cols 0:65    conv2 Toeplitz
R_WFC = 32         # rows  32:97,  cols 128:130 fc weight (rest of lane half zero)
FC_COL = 128
R_B1 = 107         # cols 0:75 and 128:203      conv1 bias, pool-folded per position
R_B2 = 108         # cols 0:65                  conv2 bias per position
R_BFC = 109        # cols 128:130               fc bias
ROWS = 112         # padded to a multiple of 8 sublanes


def pack_params(w1, b1, w2, b2, wfc, bfc):
    """Pack all parameters into one (ROWS, COLS) bf16 slab.

    Conv weights are expanded into Toeplitz matrices over channel-folded
    (B, C*L) slabs.  The maxpool(2,2) selector is folded into conv1's weight
    and bias here (host side), so the kernel never materializes it.
    Call ONCE at model init -- not per forward.
    """
    w1 = np.asarray(w1, np.float32)
    b1 = np.asarray(b1, np.float32)
    w2 = np.asarray(w2, np.float32)
    b2 = np.asarray(b2, np.float32)
    wfc = np.asarray(wfc, np.float32)
    bfc = np.asarray(bfc, np.float32)

    slab = np.zeros((ROWS, COLS), np.float32)

    # conv1 Toeplitz with the pooling selector folded in:
    #   even column  c*LP+p          <- input rows (2p + k),     weight w1[c,0,k]
    #   odd  column  ODD_OFF+c*LP+p  <- input rows (2p + 1 + k), weight w1[c,0,k]
    c, p, k = np.meshgrid(np.arange(C1), np.arange(LP), np.arange(K), indexing="ij")
    vals = w1[c.ravel(), 0, k.ravel()]
    slab[R_W1 + (2 * p + k).ravel(), (c * LP + p).ravel()] = vals
    slab[R_W1 + (2 * p + 1 + k).ravel(), (ODD_OFF + c * LP + p).ravel()] = vals
    slab[R_B1, 0:C1 * LP] = np.repeat(b1, LP)
    slab[R_B1, ODD_OFF:ODD_OFF + C1 * LP] = np.repeat(b1, LP)

    # conv2 Toeplitz on the pooled (C1*LP,) slab
    co, ci, l, k2 = np.meshgrid(np.arange(C2), np.arange(C1), np.arange(L2),
                                np.arange(K), indexing="ij")
    slab[R_W2 + (ci * LP + l + k2).ravel(), (co * L2 + l).ravel()] = \
        w2[co.ravel(), ci.ravel(), k2.ravel()]
    slab[R_B2, 0:C2 * L2] = np.repeat(b2, L2)

    # fc1 weight/bias in the unused lane half of the conv2 row range
    slab[R_WFC:R_WFC + F, FC_COL:FC_COL + NOUT] = wfc.T
    slab[R_BFC, FC_COL:FC_COL + NOUT] = bfc

    return jnp.asarray(slab, DTYPE)


def net_kernel(x_ref, p_ref, out_ref):
    x = x_ref[...]                                                # (B, 32) bf16
    w1p = p_ref[R_W1:R_W1 + L, :]                                 # (32, 256)
    w2 = p_ref[R_W2:R_W2 + C1 * LP, 0:C2 * L2]                    # (75, 65)
    wfc = p_ref[R_WFC:R_WFC + F, FC_COL:FC_COL + NOUT_PAD]        # (65, 128)
    b1p = p_ref[R_B1:R_B1 + 1, :].astype(jnp.float32)             # (1, 256)
    b2 = p_ref[R_B2:R_B2 + 1, 0:C2 * L2].astype(jnp.float32)      # (1, 65)
    bfc = p_ref[R_BFC:R_BFC + 1, FC_COL:FC_COL + NOUT_PAD].astype(jnp.float32)

    # conv1 + bias + ReLU, with the maxpool selector pre-folded into w1p/b1p
    z = jnp.maximum(
        jnp.dot(x, w1p, preferred_element_type=jnp.float32) + b1p, 0.0)  # (B,256)
    # maxpool(2,2): elementwise max of the even / odd lane-aligned halves
    pooled = jnp.maximum(z[:, 0:C1 * LP],
                         z[:, ODD_OFF:ODD_OFF + C1 * LP])                # (B,75)
    # conv2 + bias + ReLU : one MXU push on the channel-folded slab
    y2 = jnp.maximum(
        jnp.dot(pooled.astype(DTYPE), w2,
                preferred_element_type=jnp.float32) + b2, 0.0)           # (B,65)
    # fc1 : single dot, lane-dense (B,128) store; wrapper slices [:, :2]
    out_ref[...] = jnp.dot(y2.astype(DTYPE), wfc,
                           preferred_element_type=jnp.float32) + bfc


@jax.jit
def net_forward(x, p):
    """x: (B, L) float; p: packed (ROWS, COLS) bf16 slab. Returns (B, 2) f32."""
    vmem = pl.BlockSpec(memory_space=pltpu.MemorySpace.VMEM)
    out = pl.pallas_call(
        net_kernel,
        out_shape=jax.ShapeDtypeStruct((x.shape[0], NOUT_PAD), jnp.float32),
        in_specs=[vmem, vmem],
        out_specs=vmem,
    )(x.astype(DTYPE), p)
    return out[:, :NOUT]


if __name__ == "__main__":
    key = jax.random.PRNGKey(0)
    k1, k2, k3, kx = jax.random.split(key, 4)

    # deterministic init mirroring the PyTorch __init__:
    #   Conv1d weights: xavier_normal_, biases: 0.1
    #   Linear weight: N(0, 0.01), bias: 0
    std1 = (2.0 / (1 * K + C1 * K)) ** 0.5
    std2 = (2.0 / (C1 * K + C2 * K)) ** 0.5
    w1 = std1 * jax.random.normal(k1, (C1, 1, K), jnp.float32)
    b1 = jnp.full((C1,), 0.1, jnp.float32)
    w2 = std2 * jax.random.normal(k2, (C2, C1, K), jnp.float32)
    b2 = jnp.full((C2,), 0.1, jnp.float32)
    wfc = 0.01 * jax.random.normal(k3, (2, F), jnp.float32)
    bfc = jnp.zeros((2,), jnp.float32)
    x = jax.random.normal(kx, (B, L), jnp.float32)

    # Pack once (host-side numpy); reused across every forward call.
    params = pack_params(w1, b1, w2, b2, wfc, bfc)

    out = jax.block_until_ready(net_forward(x, params))

    # pure-JAX f32 reference (matches the PyTorch forward semantics)
    def ref(x):
        dn = ('NCH', 'OIH', 'NCH')
        xx = x[:, None, :]                                           # unsqueeze(dim=1)
        y1 = lax.conv_general_dilated(xx, w1, (1,), 'VALID', dimension_numbers=dn)
        y1 = jnp.maximum(y1 + b1[None, :, None], 0.0)                # conv1 + relu
        y1p = jnp.max(y1[:, :, :2 * LP].reshape(B, C1, LP, 2), -1)   # maxpool(2,2)
        y2 = lax.conv_general_dilated(y1p, w2, (1,), 'VALID', dimension_numbers=dn)
        y2 = jnp.maximum(y2 + b2[None, :, None], 0.0)                # conv2 + relu
        return y2.reshape(B, -1) @ wfc.T + bfc                       # fc1

    expected = ref(x)
    assert out.shape == (B, 2)
    # tolerance loosened vs. v1: weights/activations travel as bf16 in-kernel
    assert jnp.allclose(out, expected, atol=3e-2, rtol=3e-2), (out, expected)
    print("KERNEL_OK")
</pallas_src>

<mosaic_0001>
module attributes {stable_mosaic.version = 11 : i64} {
  func.func @net_kernel(%arg0: memref<2x32xbf16, #tpu.memory_space<vmem>>, %arg1: memref<112x256xbf16, #tpu.memory_space<vmem>>, %arg2: memref<2x128xf32, #tpu.memory_space<vmem>>) attributes {dimension_semantics = [], scalar_prefetch = 0 : i64, scratch_operands = 0 : i64, tpu.core_type = #tpu.core_type<tc>} {
    %c0 = arith.constant 0 : index
    %c0_0 = arith.constant 0 : index
    %0 = vector.load %arg0[%c0, %c0_0] : memref<2x32xbf16, #tpu.memory_space<vmem>>, vector<2x32xbf16>
    %c0_1 = arith.constant 0 : index
    %c0_2 = arith.constant 0 : index
    %1 = vector.load %arg1[%c0_1, %c0_2] : memref<112x256xbf16, #tpu.memory_space<vmem>>, vector<32x256xbf16>
    %c32 = arith.constant 32 : index
    %c0_3 = arith.constant 0 : index
    %2 = vector.load %arg1[%c32, %c0_3] : memref<112x256xbf16, #tpu.memory_space<vmem>>, vector<75x65xbf16>
    %c32_4 = arith.constant 32 : index
    %c128 = arith.constant 128 : index
    %3 = vector.load %arg1[%c32_4, %c128] : memref<112x256xbf16, #tpu.memory_space<vmem>>, vector<65x128xbf16>
    %c107 = arith.constant 107 : index
    %c0_5 = arith.constant 0 : index
    %4 = vector.load %arg1[%c107, %c0_5] : memref<112x256xbf16, #tpu.memory_space<vmem>>, vector<1x256xbf16>
    %5 = arith.extf %4 : vector<1x256xbf16> to vector<1x256xf32>
    %c108 = arith.constant 108 : index
    %c0_6 = arith.constant 0 : index
    %6 = vector.load %arg1[%c108, %c0_6] : memref<112x256xbf16, #tpu.memory_space<vmem>>, vector<1x65xbf16>
    %7 = arith.extf %6 : vector<1x65xbf16> to vector<1x65xf32>
    %c109 = arith.constant 109 : index
    %c128_7 = arith.constant 128 : index
    %8 = vector.load %arg1[%c109, %c128_7] : memref<112x256xbf16, #tpu.memory_space<vmem>>, vector<1x128xbf16>
    %9 = arith.extf %8 : vector<1x128xbf16> to vector<1x128xf32>
    %cst = arith.constant dense<0.000000e+00> : vector<2x256xf32>
    %10 = tpu.matmul %0, %1, %cst {dimension_numbers = #tpu.dot_dimension_numbers<[1], [0], [0], [1], [0, 0, 1, 1], [], []>} : vector<2x32xbf16>, vector<32x256xbf16>, vector<2x256xf32> -> vector<2x256xf32>
    %11 = vector.broadcast %5 : vector<1x256xf32> to vector<2x256xf32>
    %12 = arith.addf %10, %11 : vector<2x256xf32>
    %cst_8 = arith.constant 0.000000e+00 : f32
    %13 = vector.broadcast %cst_8 : f32 to vector<2x256xf32>
    %14 = arith.maximumf %12, %13 : vector<2x256xf32>
    %15 = vector.extract_strided_slice %14 {offsets = [0, 0], sizes = [2, 75], strides = [1, 1]} : vector<2x256xf32> to vector<2x75xf32>
    %16 = vector.extract_strided_slice %14 {offsets = [0, 128], sizes = [2, 75], strides = [1, 1]} : vector<2x256xf32> to vector<2x75xf32>
    %17 = arith.maximumf %15, %16 : vector<2x75xf32>
    %18 = arith.truncf %17 : vector<2x75xf32> to vector<2x75xbf16>
    %cst_9 = arith.constant dense<0.000000e+00> : vector<2x65xf32>
    %19 = tpu.matmul %18, %2, %cst_9 {dimension_numbers = #tpu.dot_dimension_numbers<[1], [0], [0], [1], [0, 0, 1, 1], [], []>} : vector<2x75xbf16>, vector<75x65xbf16>, vector<2x65xf32> -> vector<2x65xf32>
    %20 = vector.broadcast %7 : vector<1x65xf32> to vector<2x65xf32>
    %21 = arith.addf %19, %20 : vector<2x65xf32>
    %cst_10 = arith.constant 0.000000e+00 : f32
    %22 = vector.broadcast %cst_10 : f32 to vector<2x65xf32>
    %23 = arith.maximumf %21, %22 : vector<2x65xf32>
    %24 = arith.truncf %23 : vector<2x65xf32> to vector<2x65xbf16>
    %cst_11 = arith.constant dense<0.000000e+00> : vector<2x128xf32>
    %25 = tpu.matmul %24, %3, %cst_11 {dimension_numbers = #tpu.dot_dimension_numbers<[1], [0], [0], [1], [0, 0, 1, 1], [], []>} : vector<2x65xbf16>, vector<65x128xbf16>, vector<2x128xf32> -> vector<2x128xf32>
    %26 = vector.broadcast %9 : vector<1x128xf32> to vector<2x128xf32>
    %27 = arith.addf %25, %26 : vector<2x128xf32>
    %c0_12 = arith.constant 0 : index
    %c0_13 = arith.constant 0 : index
    %28 = vector.load %arg2[%c0_12, %c0_13] : memref<2x128xf32, #tpu.memory_space<vmem>>, vector<2x128xf32>
    tpu.vector_store %arg2[%c0_12, %c0_13], %27 {strides = array<i32>} : memref<2x128xf32, #tpu.memory_space<vmem>>, vector<2x128xf32>,
    return
  }
}

</mosaic_0001>

<llo_original>
// kernel: net_forward.1
$region0: #{net_forward.1}
  #allocation0 [shape = 'u32[]', space=smem, size = 0x4, offset = 0x4, fixed_abs, tag = 'smem constant byte address 0x4 - core index']
  #allocation1 [shape = 'u32[144,128]{1,0:T(1,128)}', space=vmem, size = 0x12000, scoped, tag = 'internal scratch']
  %s0 = inlined_call_operand.vmem [shape: bf16[2,32], index: 0, kind: input, shape index: {}]
  %s1 = inlined_call_operand.hbm [shape: bf16[112,256], index: 1, kind: input, shape index: {}]
  %s2 = inlined_call_operand.hbm [shape: f32[2,128], index: 2, kind: output, shape index: {}]
  %s3 = sld [smem:[#allocation0]]
  $region22: #{net_forward.1} parent=0
    _
  %s5 = ssub.s32 1, %s3
  %s6 = scalar_select 0, %s5, %s3
  $region1: #{net_forward.1} parent=0
    #allocation2 [shape = 'u8[57344]{0}', space=vmem, size = 0xe000, scoped, tag = 'input window, operand 1, single buffered']
    #allocation3 [shape = 's32[1]{0}', space=sflag, size = 0x4, scoped, tag = 'scoped memory for net_forward.1']
    #allocation4 [shape = 's32[1]{0}', space=sflag, size = 0x4, scoped, tag = 'scoped memory for net_forward.1']
    #allocation5 [shape = 'u8[1024]{0}', space=vmem, size = 0x400, scoped, tag = 'output window, operand 0, single buffered']
    %7 = vsyncpa [#allocation3], 0
    %8 = vsyncpa [#allocation4], 0
    // Predicated region
    $region2: #{net_forward.1} parent=1 // pred_check
      _
    $region3: #{net_forward.1} parent=1 // pred_check_branch
      %10 = sbr.rel (0) target = $region5
    $region4: #{net_forward.1} parent=1 // pred_region
      _
    $region5: #{net_forward.1} parent=1 // pred_fallthru
      _
    // Predicated region
    $region6: #{net_forward.1} parent=1 // pred_check
      _
    $region7: #{net_forward.1} parent=1 // pred_check_branch
      %12 = sbr.rel (0) target = $region9
    $region8: #{net_forward.1} parent=1 // pred_region
      %s14 = ssub.s32 1792, 1792
      %15 = vsyncadd [#allocation3], %s14
      %s16 = sshll.u32 [#allocation2], 4
      %s17 = int_to_ptr.vmem [resolvable:$true] %s16
      %22 = dma.hbm_to_vmem [thread:$0]  %s1, 1792, %s17, [#allocation3], 128, 128, 8
    $region9: #{net_forward.1} parent=1 // pred_fallthru
      _
    // Predicated region
    $region10: #{net_forward.1} parent=1 // pred_check
      _
    $region11: #{net_forward.1} parent=1 // pred_check_branch
      %24 = sbr.rel (0) target = $region13
    $region12: #{net_forward.1} parent=1 // pred_region
      %25 = dma.done [#allocation3], 1792
    $region13: #{net_forward.1} parent=1 // pred_fallthru
      _
    %v27 = vld [vmem:[%s0] sm:$0x1]
    %v28 = vld [vmem:[#allocation2] sm:$0xff]
    %v29 = vld [vmem:[#allocation2 + $0x8] sm:$0xff]
    %v30 = vld [vmem:[#allocation2 + $0x10] sm:$0xff]
    %v31 = vld [vmem:[#allocation2 + $0x18] sm:$0xff]
    %v32 = vld [vmem:[#allocation2 + $0x20] sm:$0xf]
    %v33 = vld [vmem:[#allocation2 + $0x28] sm:$0xf]
    %v34 = vld [vmem:[#allocation2 + $0x30] sm:$0xf]
    %v35 = vld [vmem:[#allocation2 + $0x38] sm:$0xf]
    %v36 = vld [vmem:[#allocation2 + $0x40] sm:$0xf]
    %v37 = vld [vmem:[#allocation2 + $0x48] sm:$0xf]
    %v38 = vld [vmem:[#allocation2 + $0x50] sm:$0xf]
    %v39 = vld [vmem:[#allocation2 + $0x58] sm:$0xf]
    %v40 = vld [vmem:[#allocation2 + $0x60] sm:$0xf]
    %v41 = vld [vmem:[#allocation2 + $0x68] sm:$0x3]
    %v42 = vld [vmem:[#allocation2 + $0x24] sm:$0xf]
    %v43 = vld [vmem:[#allocation2 + $0x2c] sm:$0xf]
    %v44 = vld [vmem:[#allocation2 + $0x34] sm:$0xf]
    %v45 = vld [vmem:[#allocation2 + $0x3c] sm:$0xf]
    %v46 = vld [vmem:[#allocation2 + $0x44] sm:$0xf]
    %v47 = vld [vmem:[#allocation2 + $0x4c] sm:$0xf]
    %v48 = vld [vmem:[#allocation2 + $0x54] sm:$0xf]
    %v49 = vld [vmem:[#allocation2 + $0x5c] sm:$0xf]
    %v50 = vld [vmem:[#allocation2 + $0x64] sm:$0x1]
    %v51 = vld [vmem:[#allocation2 + $0x68] sm:$0x22]
    %v52 = vunpack.c.l.bf16 %v51
    %v53 = vunpack.c.h.bf16 %v51
    %v54 = vld [vmem:[#allocation2 + $0x68] sm:$0x4]
    %v55 = vunpack.c.l.bf16 %v54
    %v56 = vld [vmem:[#allocation2 + $0x6c] sm:$0x4]
    %v57 = vunpack.c.l.bf16 %v56
    %v58 = vlaneseq
    %v59 = vshrl.u32 %v58, 7
    %v60 = vsub.s32 3, %v59
    %v61 = vrot.slane %v52, %v60
    %v62 = vlaneseq
    %v63 = vshrl.u32 %v62, 7
    %v64 = vsub.s32 3, %v63
    %v65 = vrot.slane %v53, %v64
    %v70 = vunpack.c.l.b16 %v28
    %v71 = vunpack.c.h.b16 %v28
    %v72 = vunpack.c.l.b16 %v29
    %v73 = vunpack.c.h.b16 %v29
    %v74 = vunpack.c.l.b16 %v30
    %v75 = vunpack.c.h.b16 %v30
    %v76 = vunpack.c.l.b16 %v31
    %v77 = vunpack.c.h.b16 %v31
    %v78 = vpack.c.b16 %v72, %v70
    %v79 = vpack.c.b16 %v73, %v71
    %v80 = vpack.c.b16 %v76, %v74
    %v81 = vpack.c.b16 %v77, %v75
    %vm86 = vcmask 261120
    %v88 = vsel %vm86, %v27, 0
    %90 = vmatprep.subr.bf16.mxu0 %v79
    %91 = vmatpush1.bf16.msra.mxu0 %v78
    %92 = vmatprep.subr.bf16.mxu0 %v81
    %93 = vmatpush1.bf16.msra.mxu0 %v80
    %94 = vmatprep.subr.bf16.mxu0 0
    %95 = vmatpush1.bf16.msra.mxu0 0
    %96 = vmatprep.subr.bf16.mxu0 0
    %97 = vmatpush1.bf16.msra.mxu0 0
    %98 = vmatprep.subr.bf16.mxu0 0
    %99 = vmatpush1.bf16.msra.mxu0 0
    %100 = vmatprep.subr.bf16.mxu0 0
    %101 = vmatpush1.bf16.msra.mxu0 0
    %102 = vmatprep.subr.bf16.mxu0 0
    %103 = vmatpush1.bf16.msra.mxu0 0
    %104 = vmatprep.subr.bf16.mxu0 0
    %105 = vmatpush1.bf16.msra.mxu0 0
    %106 = vmatprep.subr.bf16.mxu0 0
    %107 = vmatpush1.bf16.msra.mxu0 0
    %108 = vmatprep.subr.bf16.mxu0 0
    %109 = vmatpush1.bf16.msra.mxu0 0
    %110 = vmatprep.subr.bf16.mxu0 0
    %111 = vmatpush1.bf16.msra.mxu0 0
    %112 = vmatprep.subr.bf16.mxu0 0
    %113 = vmatpush1.bf16.msra.mxu0 0
    %114 = vmatprep.subr.bf16.mxu0 0
    %115 = vmatpush1.bf16.msra.mxu0 0
    %116 = vmatprep.subr.bf16.mxu0 0
    %117 = vmatpush1.bf16.msra.mxu0 0
    %118 = vmatprep.subr.bf16.mxu0 0
    %119 = vmatpush1.bf16.msra.mxu0 0
    %120 = vmatprep.subr.bf16.mxu0 0
    %121 = vmatpush1.bf16.msra.mxu0 0
    %122 = vmatprep.mubr.bf16.mxu0 0
    %123 = vmatmul.mubr.bf16.gmra.mrb[0].mxu0 %v88
    %v124 = vpop.f32.mrb[0].mxu0
    %v125 = vadd.f32 %v61, %v124
    %v126 = vpop.f32.mrb[0].mxu0
    %v127 = vadd.f32 %v65, %v126
    %v128 = vpop.f32.mrb[0].mxu0
    %v129 = vpop.f32.mrb[0].mxu0
    %130 = vdwg.mxu0
    %v131 = vmax.f32 %v125, 0.0
    %v132 = vmax.f32 %v127, 0.0
    %v133 = vmax.f32 %v131, %v132
    %v134 = vpack.c.bf16 %v133, %v133
    %v135 = vlaneseq
    %v136 = vshrl.u32 %v135, 7
    %v137 = vsub.s32 4, %v136
    %v138 = vrot.slane %v55, %v137
    %v149 = vunpack.c.l.b16 %v32
    %v150 = vunpack.c.l.b16 %v33
    %v151 = vunpack.c.l.b16 %v34
    %v152 = vunpack.c.l.b16 %v35
    %v153 = vunpack.c.l.b16 %v36
    %v154 = vunpack.c.l.b16 %v37
    %v155 = vunpack.c.l.b16 %v38
    %v156 = vunpack.c.l.b16 %v39
    %v157 = vunpack.c.l.b16 %v40
    %v158 = vunpack.c.l.b16 %v41
    %v159 = vpack.c.b16 %v150, %v149
    %v160 = vpack.c.b16 %v152, %v151
    %v161 = vpack.c.b16 %v154, %v153
    %v162 = vpack.c.b16 %v156, %v155
    %v163 = vpack.c.b16 %v158, %v157
    %vm168 = vcmask 613376
    %v170 = vsel %vm168, %v134, 0
    %vm172 = vcmask 1044480
    %vm173 = vcmask 1045504
    %v174 = vsel %vm172, 4294967295, 65535
    %v175 = vsel %vm173, %v174, 0
    %v177 = vand.u32 %v163, %v175
    %179 = vmatprep.subr.bf16.mxu0 0
    %180 = vmatpush1.bf16.msra.mxu0 %v159
    %181 = vmatprep.subr.bf16.mxu0 0
    %182 = vmatpush1.bf16.msra.mxu0 %v160
    %183 = vmatprep.subr.bf16.mxu0 0
    %184 = vmatpush1.bf16.msra.mxu0 %v161
    %185 = vmatprep.subr.bf16.mxu0 0
    %186 = vmatpush1.bf16.msra.mxu0 %v162
    %187 = vmatprep.subr.bf16.mxu0 0
    %188 = vmatpush1.bf16.msra.mxu0 %v177
    %189 = vmatprep.subr.bf16.mxu0 0
    %190 = vmatpush1.bf16.msra.mxu0 0
    %191 = vmatprep.subr.bf16.mxu0 0
    %192 = vmatpush1.bf16.msra.mxu0 0
    %193 = vmatprep.subr.bf16.mxu0 0
    %194 = vmatpush1.bf16.msra.mxu0 0
    %195 = vmatprep.subr.bf16.mxu0 0
    %196 = vmatpush1.bf16.msra.mxu0 0
    %197 = vmatprep.subr.bf16.mxu0 0
    %198 = vmatpush1.bf16.msra.mxu0 0
    %199 = vmatprep.subr.bf16.mxu0 0
    %200 = vmatpush1.bf16.msra.mxu0 0
    %201 = vmatprep.subr.bf16.mxu0 0
    %202 = vmatpush1.bf16.msra.mxu0 0
    %203 = vmatprep.subr.bf16.mxu0 0
    %204 = vmatpush1.bf16.msra.mxu0 0
    %205 = vmatprep.subr.bf16.mxu0 0
    %206 = vmatpush1.bf16.msra.mxu0 0
    %207 = vmatprep.subr.bf16.mxu0 0
    %208 = vmatpush1.bf16.msra.mxu0 0
    %209 = vmatprep.subr.bf16.mxu0 0
    %210 = vmatpush1.bf16.msra.mxu0 0
    %211 = vmatprep.mubr.bf16.mxu0 0
    %212 = vmatmul.mubr.bf16.gmra.mrb[0].mxu0 %v170
    %v213 = vpop.f32.mrb[0].mxu0
    %v214 = vadd.f32 %v138, %v213
    %v215 = vpop.f32.mrb[0].mxu0
    %v216 = vpop.f32.mrb[0].mxu0
    %v217 = vpop.f32.mrb[0].mxu0
    %218 = vdwg.mxu0
    %v219 = vmax.f32 %v214, 0.0
    %v220 = vpack.c.bf16 %v219, %v219
    %v221 = vlaneseq
    %v222 = vshrl.u32 %v221, 7
    %v223 = vsub.s32 5, %v222
    %v224 = vrot.slane %v57, %v223
    %v234 = vunpack.c.l.b16 %v42
    %v235 = vunpack.c.l.b16 %v43
    %v236 = vunpack.c.l.b16 %v44
    %v237 = vunpack.c.l.b16 %v45
    %v238 = vunpack.c.l.b16 %v46
    %v239 = vunpack.c.l.b16 %v47
    %v240 = vunpack.c.l.b16 %v48
    %v241 = vunpack.c.l.b16 %v49
    %v242 = vunpack.c.l.b16 %v50
    %v243 = vpack.c.b16 %v235, %v234
    %v244 = vpack.c.b16 %v237, %v236
    %v245 = vpack.c.b16 %v239, %v238
    %v246 = vpack.c.b16 %v241, %v240
    %v247 = vpack.c.b16 %v242, %v242
    %vm252 = vcmask 531456
    %v254 = vsel %vm252, %v220, 0
    %vm256 = vcmask 1040384
    %v257 = vsel 0, 4294967295, 65535
    %v258 = vsel %vm256, %v257, 0
    %v260 = vand.u32 %v247, %v258
    %262 = vmatprep.subr.bf16.mxu0 0
    %263 = vmatpush1.bf16.msra.mxu0 %v243
    %264 = vmatprep.subr.bf16.mxu0 0
    %265 = vmatpush1.bf16.msra.mxu0 %v244
    %266 = vmatprep.subr.bf16.mxu0 0
    %267 = vmatpush1.bf16.msra.mxu0 %v245
    %268 = vmatprep.subr.bf16.mxu0 0
    %269 = vmatpush1.bf16.msra.mxu0 %v246
    %270 = vmatprep.subr.bf16.mxu0 0
    %271 = vmatpush1.bf16.msra.mxu0 %v260
    %272 = vmatprep.subr.bf16.mxu0 0
    %273 = vmatpush1.bf16.msra.mxu0 0
    %274 = vmatprep.subr.bf16.mxu0 0
    %275 = vmatpush1.bf16.msra.mxu0 0
    %276 = vmatprep.subr.bf16.mxu0 0
    %277 = vmatpush1.bf16.msra.mxu0 0
    %278 = vmatprep.subr.bf16.mxu0 0
    %279 = vmatpush1.bf16.msra.mxu0 0
    %280 = vmatprep.subr.bf16.mxu0 0
    %281 = vmatpush1.bf16.msra.mxu0 0
    %282 = vmatprep.subr.bf16.mxu0 0
    %283 = vmatpush1.bf16.msra.mxu0 0
    %284 = vmatprep.subr.bf16.mxu0 0
    %285 = vmatpush1.bf16.msra.mxu0 0
    %286 = vmatprep.subr.bf16.mxu0 0
    %287 = vmatpush1.bf16.msra.mxu0 0
    %288 = vmatprep.subr.bf16.mxu0 0
    %289 = vmatpush1.bf16.msra.mxu0 0
    %290 = vmatprep.subr.bf16.mxu0 0
    %291 = vmatpush1.bf16.msra.mxu0 0
    %292 = vmatprep.subr.bf16.mxu0 0
    %293 = vmatpush1.bf16.msra.mxu0 0
    %294 = vmatprep.mubr.bf16.mxu0 0
    %295 = vmatmul.mubr.bf16.gmra.mrb[0].mxu0 %v254
    %v296 = vpop.f32.mrb[0].mxu0
    %v297 = vadd.f32 %v224, %v296
    %v298 = vpop.f32.mrb[0].mxu0
    %v299 = vpop.f32.mrb[0].mxu0
    %v300 = vpop.f32.mrb[0].mxu0
    %301 = vdwg.mxu0
    %302 = vst [vmem:[#allocation5] sm:$0x3] %v297
    // Predicated region
    $region14: #{net_forward.1} parent=1 // pred_check
      _
    $region15: #{net_forward.1} parent=1 // pred_check_branch
      %304 = sbr.rel (0) target = $region17
    $region16: #{net_forward.1} parent=1 // pred_region
      %s306 = ssub.s32 32, 32
      %307 = vsyncadd [#allocation4], %s306
      %s309 = sshll.u32 [#allocation5], 4
      %s310 = int_to_ptr.vmem [resolvable:$true] %s309
      %312 = dma.vmem_to_hbm [thread:$0]  %s310, 32, %s2, [#allocation4]
    $region17: #{net_forward.1} parent=1 // pred_fallthru
      _
    // Predicated region
    $region18: #{net_forward.1} parent=1 // pred_check
      _
    $region19: #{net_forward.1} parent=1 // pred_check_branch
      %314 = sbr.rel (0) target = $region21
    $region20: #{net_forward.1} parent=1 // pred_region
      %315 = dma.done [#allocation4], 32
    $region21: #{net_forward.1} parent=1 // pred_fallthru
      _
    %316 = vsyncpa [#allocation3], 1
    %317 = vsyncpa [#allocation4], 1

</llo_original>
